<compile_context>
chip_gen: v5e
topology: v5e:2x2
jax: 0.10.0
libtpu: 0.0.40
codegen_flags: <defaults>
</compile_context>

<pallas_src>
import functools

import jax
import jax.numpy as jnp
from jax.experimental import pallas as pl
from jax.experimental.pallas import tpu as pltpu


_LANE = 128
# Double-buffered input budget + an explicit scoped-VMEM limit that is safe on
# every generation (v5e/v6e physical 128 MiB, v7x physical 64 MiB per TC).
_VMEM_INPUT_BUDGET_BYTES = 16 * 1024 * 1024
_VMEM_LIMIT_BYTES = 32 * 1024 * 1024
_MAX_TILE_ROWS = 4096  # per-step overhead (~0.35us) is negligible at this size


def _ceil_div(a: int, b: int) -> int:
    return -(-a // b)


def _choose_pack(rows: int, length: int) -> int:
    """Number of logical rows packed into one kernel row (lane density)."""
    if length >= _LANE:
        return 1
    desired = max(1, min(_LANE // length, rows))
    for p in range(desired, 0, -1):
        if rows % p == 0:
            return p
    return 1


def _choose_tile_rows(rows: int, packed_len: int, itemsize: int) -> int:
    """Largest row tile whose double-buffered input fits the VMEM budget."""
    sublane = max(8, 32 // max(1, itemsize))   # 8 for f32, 16 for bf16, 32 for i8
    bytes_per_row = max(1, packed_len * itemsize)
    tile = _VMEM_INPUT_BUDGET_BYTES // (2 * bytes_per_row)
    tile = max(sublane, (tile // sublane) * sublane)
    tile = min(tile, _MAX_TILE_ROWS)
    if tile >= rows:
        # block_shape equal to the full dim is always legal.
        return rows
    return tile


def _adaptive_max_pool1d_kernel(x_ref, o_ref, *, out_dim: int, length: int,
                                pack: int):
    """x_ref: (TILE_R, pack*L) in VMEM, o_ref: (TILE_R, pack*out_dim) in VMEM.

    PyTorch adaptive bins: start_i = floor(i*L/out_dim), end_i = ceil((i+1)*L/out_dim).
    Bin boundaries are static, so each (packed-row, bin) is a static lane slice
    + lane max-reduction stored directly into its output column.
    """
    x = x_ref[...]
    for p in range(pack):
        base = p * length
        for i in range(out_dim):
            start = (i * length) // out_dim
            end = _ceil_div((i + 1) * length, out_dim)
            col = p * out_dim + i
            o_ref[:, col:col + 1] = jnp.max(
                x[:, base + start:base + end], axis=-1, keepdims=True)


def adaptive_max_pool1d(x: jax.Array, out_dim: int = 2, *,
                        tile_rows=None) -> jax.Array:
    """Equivalent of torch.nn.functional.adaptive_max_pool1d(x, out_dim).

    x: (N, C, L)  ->  (N, C, out_dim)
    """
    n, c, length = x.shape
    rows = n * c

    pack = _choose_pack(rows, length)
    rows_p = rows // pack
    packed_len = pack * length

    # Contiguous reshape: packed row r holds logical rows [r*pack, (r+1)*pack).
    x2d = x.reshape(rows_p, packed_len)

    itemsize = jnp.dtype(x.dtype).itemsize
    tile_r = tile_rows if tile_rows is not None else _choose_tile_rows(
        rows_p, packed_len, itemsize)
    tile_r = min(tile_r, rows_p)

    kernel = functools.partial(
        _adaptive_max_pool1d_kernel, out_dim=out_dim, length=length, pack=pack)

    # 1-D grid over (packed) rows only.  The packed-L axis stays un-tiled so
    # the adaptive bins always see the full length.  A partial tail block is
    # safe: reductions are along lanes, padded rows only touch output rows that
    # Pallas masks out on store.
    grid = (pl.cdiv(rows_p, tile_r),)

    out2d = pl.pallas_call(
        kernel,
        out_shape=jax.ShapeDtypeStruct((rows_p, pack * out_dim), x.dtype),
        grid=grid,
        in_specs=[pl.BlockSpec((tile_r, packed_len), lambda i: (i, 0))],
        out_specs=pl.BlockSpec((tile_r, pack * out_dim), lambda i: (i, 0)),
        compiler_params=pltpu.CompilerParams(
            dimension_semantics=("parallel",),
            vmem_limit_bytes=_VMEM_LIMIT_BYTES,
        ),
    )(x2d)

    # Contiguous reshapes back: (rows_p, pack*out_dim) -> (rows, out_dim) -> NCO.
    return out2d.reshape(n, c, out_dim)


def _reference(x: jax.Array, out_dim: int = 2) -> jax.Array:
    """Pure-JAX reference (PyTorch adaptive_max_pool1d semantics)."""
    _, _, length = x.shape
    cols = []
    for i in range(out_dim):
        start = (i * length) // out_dim
        end = _ceil_div((i + 1) * length, out_dim)
        cols.append(jnp.max(x[:, :, start:end], axis=-1, keepdims=True))
    return jnp.concatenate(cols, axis=-1)


if __name__ == "__main__":
    # MaxPooling(out_dim=2): no parameters to initialize.
    key = jax.random.PRNGKey(0)

    # Case 1: module-default shapes (batch=2, channels=4, length=16).
    # pack=8 -> a perfectly lane-dense (1, 128) input slab.
    N, C, L = 2, 4, 16
    x = jax.random.normal(key, (N, C, L), dtype=jnp.float32)
    out = jax.block_until_ready(adaptive_max_pool1d(x, out_dim=2))
    ref = _reference(x, out_dim=2)
    assert out.shape == (N, C, 2), out.shape
    assert out.dtype == x.dtype, out.dtype
    assert jnp.allclose(out, ref), "mismatch vs reference (case 1)"

    # Case 2: odd L (overlapping adaptive bins) + non-trivial packing (pack=7).
    k2 = jax.random.PRNGKey(1)
    x2 = jax.random.normal(k2, (3, 7, 17), dtype=jnp.float32)
    out2 = jax.block_until_ready(adaptive_max_pool1d(x2, out_dim=2))
    assert out2.shape == (3, 7, 2), out2.shape
    assert jnp.allclose(out2, _reference(x2, out_dim=2)), \
        "mismatch vs reference (case 2, packed lanes)"

    # Case 3: multi-block grid with a partial tail block (rows_p=13, tile=8).
    k3 = jax.random.PRNGKey(2)
    x3 = jax.random.normal(k3, (5, 13, 17), dtype=jnp.float32)
    out3 = jax.block_until_ready(adaptive_max_pool1d(x3, out_dim=2, tile_rows=8))
    assert out3.shape == (5, 13, 2), out3.shape
    assert jnp.allclose(out3, _reference(x3, out_dim=2)), \
        "mismatch vs reference (case 3, tiled grid + tail block)"

    # Case 4: bf16 dtype, L >= 128 (no packing path).
    k4 = jax.random.PRNGKey(3)
    x4 = jax.random.normal(k4, (2, 4, 256), dtype=jnp.bfloat16)
    out4 = jax.block_until_ready(adaptive_max_pool1d(x4, out_dim=2))
    assert out4.shape == (2, 4, 2), out4.shape
    assert out4.dtype == jnp.bfloat16
    assert jnp.allclose(out4.astype(jnp.float32),
                        _reference(x4, out_dim=2).astype(jnp.float32)), \
        "mismatch vs reference (case 4, bf16 / no packing)"

    print("KERNEL_OK")
</pallas_src>

<mosaic_0001>
module attributes {stable_mosaic.version = 11 : i64} {
  func.func @_adaptive_max_pool1d_kernel(%arg0: i32, %arg1: memref<1x128xf32, #tpu.memory_space<vmem>>, %arg2: memref<1x16xf32, #tpu.memory_space<vmem>>) attributes {dimension_semantics = [#tpu.dimension_semantics<parallel>], iteration_bounds = array<i64: 1>, scalar_prefetch = 0 : i64, scratch_operands = 0 : i64, tpu.core_type = #tpu.core_type<tc>, window_params = [{transform_indices = @transform_0, window_bounds = array<i64: 1, 128>}, {transform_indices = @transform_1, window_bounds = array<i64: 1, 16>}]} {
    %c0 = arith.constant 0 : index
    %c0_0 = arith.constant 0 : index
    %0 = vector.load %arg1[%c0, %c0_0] : memref<1x128xf32, #tpu.memory_space<vmem>>, vector<1x128xf32>
    %1 = vector.extract_strided_slice %0 {offsets = [0, 0], sizes = [1, 8], strides = [1, 1]} : vector<1x128xf32> to vector<1x8xf32>
    %cst = arith.constant dense<0xFF800000> : vector<1xf32>
    %2 = vector.multi_reduction <maximumf>, %1, %cst [1] : vector<1x8xf32> to vector<1xf32>
    %3 = vector.shape_cast %2 : vector<1xf32> to vector<1x1xf32>
    %c0_1 = arith.constant 0 : index
    %c0_2 = arith.constant 0 : index
    %4 = vector.load %arg2[%c0_1, %c0_2] : memref<1x16xf32, #tpu.memory_space<vmem>>, vector<1x1xf32>
    tpu.vector_store %arg2[%c0_1, %c0_2], %3 {strides = array<i32>} : memref<1x16xf32, #tpu.memory_space<vmem>>, vector<1x1xf32>,
    %5 = vector.extract_strided_slice %0 {offsets = [0, 8], sizes = [1, 8], strides = [1, 1]} : vector<1x128xf32> to vector<1x8xf32>
    %cst_3 = arith.constant dense<0xFF800000> : vector<1xf32>
    %6 = vector.multi_reduction <maximumf>, %5, %cst_3 [1] : vector<1x8xf32> to vector<1xf32>
    %7 = vector.shape_cast %6 : vector<1xf32> to vector<1x1xf32>
    %c0_4 = arith.constant 0 : index
    %c1 = arith.constant 1 : index
    %8 = vector.load %arg2[%c0_4, %c1] : memref<1x16xf32, #tpu.memory_space<vmem>>, vector<1x1xf32>
    tpu.vector_store %arg2[%c0_4, %c1], %7 {strides = array<i32>} : memref<1x16xf32, #tpu.memory_space<vmem>>, vector<1x1xf32>,
    %9 = vector.extract_strided_slice %0 {offsets = [0, 16], sizes = [1, 8], strides = [1, 1]} : vector<1x128xf32> to vector<1x8xf32>
    %cst_5 = arith.constant dense<0xFF800000> : vector<1xf32>
    %10 = vector.multi_reduction <maximumf>, %9, %cst_5 [1] : vector<1x8xf32> to vector<1xf32>
    %11 = vector.shape_cast %10 : vector<1xf32> to vector<1x1xf32>
    %c0_6 = arith.constant 0 : index
    %c2 = arith.constant 2 : index
    %12 = vector.load %arg2[%c0_6, %c2] : memref<1x16xf32, #tpu.memory_space<vmem>>, vector<1x1xf32>
    tpu.vector_store %arg2[%c0_6, %c2], %11 {strides = array<i32>} : memref<1x16xf32, #tpu.memory_space<vmem>>, vector<1x1xf32>,
    %13 = vector.extract_strided_slice %0 {offsets = [0, 24], sizes = [1, 8], strides = [1, 1]} : vector<1x128xf32> to vector<1x8xf32>
    %cst_7 = arith.constant dense<0xFF800000> : vector<1xf32>
    %14 = vector.multi_reduction <maximumf>, %13, %cst_7 [1] : vector<1x8xf32> to vector<1xf32>
    %15 = vector.shape_cast %14 : vector<1xf32> to vector<1x1xf32>
    %c0_8 = arith.constant 0 : index
    %c3 = arith.constant 3 : index
    %16 = vector.load %arg2[%c0_8, %c3] : memref<1x16xf32, #tpu.memory_space<vmem>>, vector<1x1xf32>
    tpu.vector_store %arg2[%c0_8, %c3], %15 {strides = array<i32>} : memref<1x16xf32, #tpu.memory_space<vmem>>, vector<1x1xf32>,
    %17 = vector.extract_strided_slice %0 {offsets = [0, 32], sizes = [1, 8], strides = [1, 1]} : vector<1x128xf32> to vector<1x8xf32>
    %cst_9 = arith.constant dense<0xFF800000> : vector<1xf32>
    %18 = vector.multi_reduction <maximumf>, %17, %cst_9 [1] : vector<1x8xf32> to vector<1xf32>
    %19 = vector.shape_cast %18 : vector<1xf32> to vector<1x1xf32>
    %c0_10 = arith.constant 0 : index
    %c4 = arith.constant 4 : index
    %20 = vector.load %arg2[%c0_10, %c4] : memref<1x16xf32, #tpu.memory_space<vmem>>, vector<1x1xf32>
    tpu.vector_store %arg2[%c0_10, %c4], %19 {strides = array<i32>} : memref<1x16xf32, #tpu.memory_space<vmem>>, vector<1x1xf32>,
    %21 = vector.extract_strided_slice %0 {offsets = [0, 40], sizes = [1, 8], strides = [1, 1]} : vector<1x128xf32> to vector<1x8xf32>
    %cst_11 = arith.constant dense<0xFF800000> : vector<1xf32>
    %22 = vector.multi_reduction <maximumf>, %21, %cst_11 [1] : vector<1x8xf32> to vector<1xf32>
    %23 = vector.shape_cast %22 : vector<1xf32> to vector<1x1xf32>
    %c0_12 = arith.constant 0 : index
    %c5 = arith.constant 5 : index
    %24 = vector.load %arg2[%c0_12, %c5] : memref<1x16xf32, #tpu.memory_space<vmem>>, vector<1x1xf32>
    tpu.vector_store %arg2[%c0_12, %c5], %23 {strides = array<i32>} : memref<1x16xf32, #tpu.memory_space<vmem>>, vector<1x1xf32>,
    %25 = vector.extract_strided_slice %0 {offsets = [0, 48], sizes = [1, 8], strides = [1, 1]} : vector<1x128xf32> to vector<1x8xf32>
    %cst_13 = arith.constant dense<0xFF800000> : vector<1xf32>
    %26 = vector.multi_reduction <maximumf>, %25, %cst_13 [1] : vector<1x8xf32> to vector<1xf32>
    %27 = vector.shape_cast %26 : vector<1xf32> to vector<1x1xf32>
    %c0_14 = arith.constant 0 : index
    %c6 = arith.constant 6 : index
    %28 = vector.load %arg2[%c0_14, %c6] : memref<1x16xf32, #tpu.memory_space<vmem>>, vector<1x1xf32>
    tpu.vector_store %arg2[%c0_14, %c6], %27 {strides = array<i32>} : memref<1x16xf32, #tpu.memory_space<vmem>>, vector<1x1xf32>,
    %29 = vector.extract_strided_slice %0 {offsets = [0, 56], sizes = [1, 8], strides = [1, 1]} : vector<1x128xf32> to vector<1x8xf32>
    %cst_15 = arith.constant dense<0xFF800000> : vector<1xf32>
    %30 = vector.multi_reduction <maximumf>, %29, %cst_15 [1] : vector<1x8xf32> to vector<1xf32>
    %31 = vector.shape_cast %30 : vector<1xf32> to vector<1x1xf32>
    %c0_16 = arith.constant 0 : index
    %c7 = arith.constant 7 : index
    %32 = vector.load %arg2[%c0_16, %c7] : memref<1x16xf32, #tpu.memory_space<vmem>>, vector<1x1xf32>
    tpu.vector_store %arg2[%c0_16, %c7], %31 {strides = array<i32>} : memref<1x16xf32, #tpu.memory_space<vmem>>, vector<1x1xf32>,
    %33 = vector.extract_strided_slice %0 {offsets = [0, 64], sizes = [1, 8], strides = [1, 1]} : vector<1x128xf32> to vector<1x8xf32>
    %cst_17 = arith.constant dense<0xFF800000> : vector<1xf32>
    %34 = vector.multi_reduction <maximumf>, %33, %cst_17 [1] : vector<1x8xf32> to vector<1xf32>
    %35 = vector.shape_cast %34 : vector<1xf32> to vector<1x1xf32>
    %c0_18 = arith.constant 0 : index
    %c8 = arith.constant 8 : index
    %36 = vector.load %arg2[%c0_18, %c8] : memref<1x16xf32, #tpu.memory_space<vmem>>, vector<1x1xf32>
    tpu.vector_store %arg2[%c0_18, %c8], %35 {strides = array<i32>} : memref<1x16xf32, #tpu.memory_space<vmem>>, vector<1x1xf32>,
    %37 = vector.extract_strided_slice %0 {offsets = [0, 72], sizes = [1, 8], strides = [1, 1]} : vector<1x128xf32> to vector<1x8xf32>
    %cst_19 = arith.constant dense<0xFF800000> : vector<1xf32>
    %38 = vector.multi_reduction <maximumf>, %37, %cst_19 [1] : vector<1x8xf32> to vector<1xf32>
    %39 = vector.shape_cast %38 : vector<1xf32> to vector<1x1xf32>
    %c0_20 = arith.constant 0 : index
    %c9 = arith.constant 9 : index
    %40 = vector.load %arg2[%c0_20, %c9] : memref<1x16xf32, #tpu.memory_space<vmem>>, vector<1x1xf32>
    tpu.vector_store %arg2[%c0_20, %c9], %39 {strides = array<i32>} : memref<1x16xf32, #tpu.memory_space<vmem>>, vector<1x1xf32>,
    %41 = vector.extract_strided_slice %0 {offsets = [0, 80], sizes = [1, 8], strides = [1, 1]} : vector<1x128xf32> to vector<1x8xf32>
    %cst_21 = arith.constant dense<0xFF800000> : vector<1xf32>
    %42 = vector.multi_reduction <maximumf>, %41, %cst_21 [1] : vector<1x8xf32> to vector<1xf32>
    %43 = vector.shape_cast %42 : vector<1xf32> to vector<1x1xf32>
    %c0_22 = arith.constant 0 : index
    %c10 = arith.constant 10 : index
    %44 = vector.load %arg2[%c0_22, %c10] : memref<1x16xf32, #tpu.memory_space<vmem>>, vector<1x1xf32>
    tpu.vector_store %arg2[%c0_22, %c10], %43 {strides = array<i32>} : memref<1x16xf32, #tpu.memory_space<vmem>>, vector<1x1xf32>,
    %45 = vector.extract_strided_slice %0 {offsets = [0, 88], sizes = [1, 8], strides = [1, 1]} : vector<1x128xf32> to vector<1x8xf32>
    %cst_23 = arith.constant dense<0xFF800000> : vector<1xf32>
    %46 = vector.multi_reduction <maximumf>, %45, %cst_23 [1] : vector<1x8xf32> to vector<1xf32>
    %47 = vector.shape_cast %46 : vector<1xf32> to vector<1x1xf32>
    %c0_24 = arith.constant 0 : index
    %c11 = arith.constant 11 : index
    %48 = vector.load %arg2[%c0_24, %c11] : memref<1x16xf32, #tpu.memory_space<vmem>>, vector<1x1xf32>
    tpu.vector_store %arg2[%c0_24, %c11], %47 {strides = array<i32>} : memref<1x16xf32, #tpu.memory_space<vmem>>, vector<1x1xf32>,
    %49 = vector.extract_strided_slice %0 {offsets = [0, 96], sizes = [1, 8], strides = [1, 1]} : vector<1x128xf32> to vector<1x8xf32>
    %cst_25 = arith.constant dense<0xFF800000> : vector<1xf32>
    %50 = vector.multi_reduction <maximumf>, %49, %cst_25 [1] : vector<1x8xf32> to vector<1xf32>
    %51 = vector.shape_cast %50 : vector<1xf32> to vector<1x1xf32>
    %c0_26 = arith.constant 0 : index
    %c12 = arith.constant 12 : index
    %52 = vector.load %arg2[%c0_26, %c12] : memref<1x16xf32, #tpu.memory_space<vmem>>, vector<1x1xf32>
    tpu.vector_store %arg2[%c0_26, %c12], %51 {strides = array<i32>} : memref<1x16xf32, #tpu.memory_space<vmem>>, vector<1x1xf32>,
    %53 = vector.extract_strided_slice %0 {offsets = [0, 104], sizes = [1, 8], strides = [1, 1]} : vector<1x128xf32> to vector<1x8xf32>
    %cst_27 = arith.constant dense<0xFF800000> : vector<1xf32>
    %54 = vector.multi_reduction <maximumf>, %53, %cst_27 [1] : vector<1x8xf32> to vector<1xf32>
    %55 = vector.shape_cast %54 : vector<1xf32> to vector<1x1xf32>
    %c0_28 = arith.constant 0 : index
    %c13 = arith.constant 13 : index
    %56 = vector.load %arg2[%c0_28, %c13] : memref<1x16xf32, #tpu.memory_space<vmem>>, vector<1x1xf32>
    tpu.vector_store %arg2[%c0_28, %c13], %55 {strides = array<i32>} : memref<1x16xf32, #tpu.memory_space<vmem>>, vector<1x1xf32>,
    %57 = vector.extract_strided_slice %0 {offsets = [0, 112], sizes = [1, 8], strides = [1, 1]} : vector<1x128xf32> to vector<1x8xf32>
    %cst_29 = arith.constant dense<0xFF800000> : vector<1xf32>
    %58 = vector.multi_reduction <maximumf>, %57, %cst_29 [1] : vector<1x8xf32> to vector<1xf32>
    %59 = vector.shape_cast %58 : vector<1xf32> to vector<1x1xf32>
    %c0_30 = arith.constant 0 : index
    %c14 = arith.constant 14 : index
    %60 = vector.load %arg2[%c0_30, %c14] : memref<1x16xf32, #tpu.memory_space<vmem>>, vector<1x1xf32>
    tpu.vector_store %arg2[%c0_30, %c14], %59 {strides = array<i32>} : memref<1x16xf32, #tpu.memory_space<vmem>>, vector<1x1xf32>,
    %61 = vector.extract_strided_slice %0 {offsets = [0, 120], sizes = [1, 8], strides = [1, 1]} : vector<1x128xf32> to vector<1x8xf32>
    %cst_31 = arith.constant dense<0xFF800000> : vector<1xf32>
    %62 = vector.multi_reduction <maximumf>, %61, %cst_31 [1] : vector<1x8xf32> to vector<1xf32>
    %63 = vector.shape_cast %62 : vector<1xf32> to vector<1x1xf32>
    %c0_32 = arith.constant 0 : index
    %c15 = arith.constant 15 : index
    %64 = vector.load %arg2[%c0_32, %c15] : memref<1x16xf32, #tpu.memory_space<vmem>>, vector<1x1xf32>
    tpu.vector_store %arg2[%c0_32, %c15], %63 {strides = array<i32>} : memref<1x16xf32, #tpu.memory_space<vmem>>, vector<1x1xf32>,
    return
  }
  func.func @transform_0(%arg0: i32) -> (i32, i32) {
    %c0_i32 = arith.constant 0 : i32
    %c0_i32_0 = arith.constant 0 : i32
    return %arg0, %c0_i32 : i32, i32
  }
  func.func @transform_1(%arg0: i32) -> (i32, i32) {
    %c0_i32 = arith.constant 0 : i32
    %c0_i32_0 = arith.constant 0 : i32
    return %arg0, %c0_i32 : i32, i32
  }
}

</mosaic_0001>

<llo_original>
// kernel: tpu_custom_call.1
$region0: #{tpu_custom_call.1}
  #allocation0 [shape = 'u32[]', space=smem, size = 0x4, offset = 0x4, fixed_abs, tag = 'smem constant byte address 0x4 - core index']
  #allocation1 [shape = 'u32[72,128]{1,0:T(1,128)}', space=vmem, size = 0x9000, scoped, tag = 'internal scratch']
  %s0 = inlined_call_operand.hbm [shape: f32[1,128], index: 0, kind: input, shape index: {}]
  %s1 = inlined_call_operand.hbm [shape: f32[1,16], index: 1, kind: output, shape index: {}]
  %s2 = sld [smem:[#allocation0]]
  $region18: #{tpu_custom_call.1} parent=0
    _
  %s4 = ssub.s32 1, %s2
  %s5 = scalar_select 0, %s4, %s2
  $region1: #{tpu_custom_call.1} parent=0
    #allocation2 [shape = 'u8[512]{0}', space=vmem, size = 0x400, scoped, tag = 'input window, operand 0, single buffered']
    #allocation3 [shape = 's32[1]{0}', space=sflag, size = 0x4, scoped, tag = 'scoped memory for tpu_custom_call.1']
    #allocation4 [shape = 's32[1]{0}', space=sflag, size = 0x4, scoped, tag = 'scoped memory for tpu_custom_call.1']
    #allocation5 [shape = 'u8[512]{0}', space=vmem, size = 0x400, scoped, tag = 'output window, operand 0, single buffered']
    %6 = vsyncpa [#allocation3], 0
    %7 = vsyncpa [#allocation4], 0
    // Predicated region
    $region2: #{tpu_custom_call.1} parent=1 // pred_check
      _
    $region3: #{tpu_custom_call.1} parent=1 // pred_check_branch
      %9 = sbr.rel (0) target = $region5
    $region4: #{tpu_custom_call.1} parent=1 // pred_region
      %11 = vsyncadd [#allocation3], 0
      %s13 = sshll.u32 %s0, 4
      %s14 = int_to_ptr.hbm [resolvable:$true] %s13
      %s15 = sshll.u32 [#allocation2], 4
      %s16 = int_to_ptr.vmem [resolvable:$true] %s15
      %18 = dma.hbm_to_vmem [thread:$0]  %s14, 16, %s16, [#allocation3]
    $region5: #{tpu_custom_call.1} parent=1 // pred_fallthru
      _
    // Predicated region
    $region6: #{tpu_custom_call.1} parent=1 // pred_check
      _
    $region7: #{tpu_custom_call.1} parent=1 // pred_check_branch
      %20 = sbr.rel (0) target = $region9
    $region8: #{tpu_custom_call.1} parent=1 // pred_region
      %22 = dma.done [#allocation3], 16
    $region9: #{tpu_custom_call.1} parent=1 // pred_fallthru
      _
    %v23 = vld [vmem:[#allocation2] sm:$0x1]
    %vm24 = vcmask 57344
    %v25 = vsel %vm24, %v23, -inf
    %26 = vmax.xlane.f32.xlu0 %v25
    %v27 = vpop.xlane.xlu0 %26
    %vm28 = vcmask 0
    %29 = vst.msk [vmem:[#allocation5] sm:$0x1] %vm28, %v27
    %vm30 = vcmask 122944
    %v31 = vsel %vm30, %v23, -inf
    %32 = vmax.xlane.f32.xlu0 %v31
    %v33 = vpop.xlane.xlu0 %32
    %vm34 = vcmask 8200
    %35 = vst.msk [vmem:[#allocation5] sm:$0x1] %vm34, %v33
    %vm36 = vcmask 188544
    %v37 = vsel %vm36, %v23, -inf
    %38 = vmax.xlane.f32.xlu0 %v37
    %v39 = vpop.xlane.xlu0 %38
    %vm40 = vcmask 16400
    %41 = vst.msk [vmem:[#allocation5] sm:$0x1] %vm40, %v39
    %vm42 = vcmask 254144
    %v43 = vsel %vm42, %v23, -inf
    %44 = vmax.xlane.f32.xlu0 %v43
    %v45 = vpop.xlane.xlu0 %44
    %vm46 = vcmask 24600
    %47 = vst.msk [vmem:[#allocation5] sm:$0x1] %vm46, %v45
    %vm48 = vcmask 319744
    %v49 = vsel %vm48, %v23, -inf
    %50 = vmax.xlane.f32.xlu0 %v49
    %v51 = vpop.xlane.xlu0 %50
    %vm52 = vcmask 32800
    %53 = vst.msk [vmem:[#allocation5] sm:$0x1] %vm52, %v51
    %vm54 = vcmask 385344
    %v55 = vsel %vm54, %v23, -inf
    %56 = vmax.xlane.f32.xlu0 %v55
    %v57 = vpop.xlane.xlu0 %56
    %vm58 = vcmask 41000
    %59 = vst.msk [vmem:[#allocation5] sm:$0x1] %vm58, %v57
    %vm60 = vcmask 450944
    %v61 = vsel %vm60, %v23, -inf
    %62 = vmax.xlane.f32.xlu0 %v61
    %v63 = vpop.xlane.xlu0 %62
    %vm64 = vcmask 49200
    %65 = vst.msk [vmem:[#allocation5] sm:$0x1] %vm64, %v63
    %vm66 = vcmask 516544
    %v67 = vsel %vm66, %v23, -inf
    %68 = vmax.xlane.f32.xlu0 %v67
    %v69 = vpop.xlane.xlu0 %68
    %vm70 = vcmask 57400
    %71 = vst.msk [vmem:[#allocation5] sm:$0x1] %vm70, %v69
    %vm72 = vcmask 582144
    %v73 = vsel %vm72, %v23, -inf
    %74 = vmax.xlane.f32.xlu0 %v73
    %v75 = vpop.xlane.xlu0 %74
    %vm76 = vcmask 65600
    %77 = vst.msk [vmem:[#allocation5] sm:$0x1] %vm76, %v75
    %vm78 = vcmask 647744
    %v79 = vsel %vm78, %v23, -inf
    %80 = vmax.xlane.f32.xlu0 %v79
    %v81 = vpop.xlane.xlu0 %80
    %vm82 = vcmask 73800
    %83 = vst.msk [vmem:[#allocation5] sm:$0x1] %vm82, %v81
    %vm84 = vcmask 713344
    %v85 = vsel %vm84, %v23, -inf
    %86 = vmax.xlane.f32.xlu0 %v85
    %v87 = vpop.xlane.xlu0 %86
    %vm88 = vcmask 82000
    %89 = vst.msk [vmem:[#allocation5] sm:$0x1] %vm88, %v87
    %vm90 = vcmask 778944
    %v91 = vsel %vm90, %v23, -inf
    %92 = vmax.xlane.f32.xlu0 %v91
    %v93 = vpop.xlane.xlu0 %92
    %vm94 = vcmask 90200
    %95 = vst.msk [vmem:[#allocation5] sm:$0x1] %vm94, %v93
    %vm96 = vcmask 844544
    %v97 = vsel %vm96, %v23, -inf
    %98 = vmax.xlane.f32.xlu0 %v97
    %v99 = vpop.xlane.xlu0 %98
    %vm100 = vcmask 98400
    %101 = vst.msk [vmem:[#allocation5] sm:$0x1] %vm100, %v99
    %vm102 = vcmask 910144
    %v103 = vsel %vm102, %v23, -inf
    %104 = vmax.xlane.f32.xlu0 %v103
    %v105 = vpop.xlane.xlu0 %104
    %vm106 = vcmask 106600
    %107 = vst.msk [vmem:[#allocation5] sm:$0x1] %vm106, %v105
    %vm108 = vcmask 975744
    %v109 = vsel %vm108, %v23, -inf
    %110 = vmax.xlane.f32.xlu0 %v109
    %v111 = vpop.xlane.xlu0 %110
    %vm112 = vcmask 114800
    %113 = vst.msk [vmem:[#allocation5] sm:$0x1] %vm112, %v111
    %vm114 = vcmask 1041344
    %v115 = vsel %vm114, %v23, -inf
    %116 = vmax.xlane.f32.xlu0 %v115
    %v117 = vpop.xlane.xlu0 %116
    %vm118 = vcmask 123000
    %119 = vst.msk [vmem:[#allocation5] sm:$0x1] %vm118, %v117
    // Predicated region
    $region10: #{tpu_custom_call.1} parent=1 // pred_check
      _
    $region11: #{tpu_custom_call.1} parent=1 // pred_check_branch
      %121 = sbr.rel (0) target = $region13
    $region12: #{tpu_custom_call.1} parent=1 // pred_region
      %123 = vsyncadd [#allocation4], 0
      %s125 = sshll.u32 [#allocation5], 4
      %s126 = int_to_ptr.vmem [resolvable:$true] %s125
      %s127 = sshll.u32 %s1, 4
      %s128 = int_to_ptr.hbm [resolvable:$true] %s127
      %130 = dma.vmem_to_hbm [thread:$0]  %s126, 16, %s128, [#allocation4]
    $region13: #{tpu_custom_call.1} parent=1 // pred_fallthru
      _
    // Predicated region
    $region14: #{tpu_custom_call.1} parent=1 // pred_check
      _
    $region15: #{tpu_custom_call.1} parent=1 // pred_check_branch
      %132 = sbr.rel (0) target = $region17
    $region16: #{tpu_custom_call.1} parent=1 // pred_region
      %134 = dma.done [#allocation4], 16
    $region17: #{tpu_custom_call.1} parent=1 // pred_fallthru
      _
    %135 = vsyncpa [#allocation3], 1
    %136 = vsyncpa [#allocation4], 1

</llo_original>
